<compile_context>
chip_gen: v7x
topology: tpu7x:2x2x1
jax: 0.10.0
libtpu: 0.0.40
codegen_flags: <defaults>
</compile_context>

<pallas_src>
import jax
import jax.numpy as jnp
from jax.experimental import pallas as pl
from jax.experimental.pallas import tpu as pltpu

BN_EPS = 1e-5


def _sigmoid(z):
    # written explicitly so kernel and reference use the exact same formula
    return 1.0 / (1.0 + jnp.exp(-z))


# ---------------------------------------------------------------------------
# Fused CBAM kernel: ChannelGate MLP + gating, ChannelPool, 7x7 conv (as one
# matmul), folded BatchNorm, sigmoid spatial gating.  Single invocation,
# whole arrays resident in VMEM.
# ---------------------------------------------------------------------------
def _cbam_kernel(x_ref, w1t_ref, b1_ref, w2t_ref, b2_ref, m_ref, bbn_ref, out_ref):
    x = x_ref[...]                                   # (B, C, HW) float32
    B = x.shape[0]

    # ---------------- ChannelGate ----------------
    avg_p = jnp.mean(x, axis=2)                      # (B, C)  AdaptiveAvgPool2d(1)
    max_p = jnp.max(x, axis=2)                       # (B, C)  AdaptiveMaxPool2d(1)

    # Fused fc1: row-stack both pools -> ONE (2B, C) @ (C, hid) MXU matmul.
    pooled = jnp.concatenate([avg_p, max_p], axis=0)         # (2B, C)
    h = jnp.maximum(
        jnp.dot(pooled, w1t_ref[...], preferred_element_type=jnp.float32)
        + b1_ref[...], 0.0)                                  # (2B, hid)

    # fc2 is linear  =>  mlp(avg) + mlp(max) == (relu_avg + relu_max) @ W2 + 2*b2
    att = (jnp.dot(h[:B] + h[B:], w2t_ref[...],
                   preferred_element_type=jnp.float32)
           + 2.0 * b2_ref[...])                              # (B, C)

    x_ch = x * _sigmoid(att)[:, :, None]                     # (B, C, HW)
    # Park x_ch in the output VMEM tile so its vregs are not live across the
    # big conv matmul below (the final gating re-reads it from out_ref).
    out_ref[...] = x_ch

    # ---------------- SpatialGate ----------------
    cmax = jnp.max(x_ch, axis=1)                             # (B, HW)  ChannelPool max
    cmean = jnp.mean(x_ch, axis=1)                           # (B, HW)  ChannelPool mean

    # Fused 7x7 conv (2->1 chan, pad 3) + folded eval-mode BN:
    # ONE (B, 2HW) @ (2HW, HW) matmul (block-row stacked conv matrix).
    lhs = jnp.concatenate([cmax, cmean], axis=-1)            # (B, 2*HW)
    logits = (jnp.dot(lhs, m_ref[...], preferred_element_type=jnp.float32)
              + bbn_ref[0, 0])                               # (B, HW)

    # Read-modify-write of the lane-dense output tile (no masked stores).
    out_ref[...] = out_ref[...] * _sigmoid(logits)[:, None, :]


# ---------------------------------------------------------------------------
# Parameter-only preprocessing (per weight update, NOT per forward call)
# ---------------------------------------------------------------------------
def _conv7x7_to_matrix(k, H, W):
    """(1, 2, 7, 7) OIHW weight -> (2, H*W, H*W) matrices M such that
    conv2d(x, k, padding=3)[b, 0].flatten() == sum_c x[b, c].flatten() @ M[c]."""
    k = k[0]                                         # (2, 7, 7)
    hi = jnp.arange(H)
    wi = jnp.arange(W)
    dh = hi[:, None] - hi[None, :] + 3               # (H_in, H_out)
    dw = wi[:, None] - wi[None, :] + 3               # (W_in, W_out)
    valid = ((dh >= 0) & (dh < 7))[:, :, None, None] & \
            ((dw >= 0) & (dw < 7))[None, None, :, :]
    ksel = k[:, jnp.clip(dh, 0, 6)[:, :, None, None],
             jnp.clip(dw, 0, 6)[None, None, :, :]]   # (2, Hin, Hout, Win, Wout)
    m = jnp.where(valid[None], ksel, 0.0)
    m = jnp.transpose(m, (0, 1, 3, 2, 4)).reshape(2, H * W, H * W)
    return m                                          # rows: input (hi*W+wi)


def precompute_spatial(params, H, W):
    """Hoisted out of the per-call path: build the BN-folded Toeplitz matrix
    once per weight update.  Returns:
      m_stacked : (2*HW, HW) f32 — row block 0 multiplies ChannelPool max,
                  row block 1 multiplies ChannelPool mean (BN scale folded in)
      b_bn      : (1, 1) f32    — folded BN bias (SMEM scalar in the kernel)
    """
    a = params["bn_gamma"] / jnp.sqrt(params["bn_var"] + BN_EPS)        # (1,)
    m = _conv7x7_to_matrix(params["k_spatial"], H, W) * a[0]            # (2, HW, HW)
    m_stacked = m.reshape(2 * H * W, H * W)
    b_bn = (params["bn_beta"] - a * params["bn_mean"]).reshape(1, 1)
    return m_stacked, b_bn


# ---------------------------------------------------------------------------
# Jitted forward: reshapes + a single pallas_call, no parameter math
# ---------------------------------------------------------------------------
@jax.jit
def cbam_forward(x_nchw, w1t, b1, w2t, b2, m_stacked, b_bn):
    B, C, H, W = x_nchw.shape
    HW = H * W
    x_flat = x_nchw.reshape(B, C, HW)                # pure reshape, no transpose

    out_flat = pl.pallas_call(
        _cbam_kernel,
        out_shape=jax.ShapeDtypeStruct((B, C, HW), jnp.float32),
        in_specs=[
            pl.BlockSpec(memory_space=pltpu.MemorySpace.VMEM),   # x
            pl.BlockSpec(memory_space=pltpu.MemorySpace.VMEM),   # w1t
            pl.BlockSpec(memory_space=pltpu.MemorySpace.VMEM),   # b1
            pl.BlockSpec(memory_space=pltpu.MemorySpace.VMEM),   # w2t
            pl.BlockSpec(memory_space=pltpu.MemorySpace.VMEM),   # b2
            pl.BlockSpec(memory_space=pltpu.MemorySpace.VMEM),   # stacked conv matrix
            pl.BlockSpec(memory_space=pltpu.MemorySpace.SMEM),   # folded BN bias
        ],
        out_specs=pl.BlockSpec(memory_space=pltpu.MemorySpace.VMEM),
    )(x_flat, w1t, b1, w2t, b2, m_stacked, b_bn)

    return out_flat.reshape(B, C, H, W)


# ---------------------------------------------------------------------------
# Pure-JAX reference (eval mode) for correctness checking
# ---------------------------------------------------------------------------
def reference_forward(x, params):
    hp = jax.lax.Precision.HIGHEST
    avg_p = jnp.mean(x, axis=(2, 3))
    max_p = jnp.max(x, axis=(2, 3))

    def mlp(p):
        h = jnp.maximum(jnp.dot(p, params["w1t"], precision=hp) + params["b1"], 0.0)
        return jnp.dot(h, params["w2t"], precision=hp) + params["b2"]

    att = mlp(avg_p) + mlp(max_p)
    x_ch = x * _sigmoid(att)[:, :, None, None]

    cmax = jnp.max(x_ch, axis=1, keepdims=True)
    cmean = jnp.mean(x_ch, axis=1, keepdims=True)
    comp = jnp.concatenate([cmax, cmean], axis=1)                 # (B, 2, H, W)
    conv = jax.lax.conv_general_dilated(
        comp, params["k_spatial"], window_strides=(1, 1),
        padding=((3, 3), (3, 3)),
        dimension_numbers=("NCHW", "OIHW", "NCHW"),
        precision=hp)                                             # (B, 1, H, W)
    a = params["bn_gamma"] / jnp.sqrt(params["bn_var"] + BN_EPS)
    bn = a * (conv - params["bn_mean"]) + params["bn_beta"]
    return x_ch * _sigmoid(bn)


if __name__ == "__main__":
    # gate_channels=32, reduction_ratio=16 -> hidden=2; 16x16 spatial => HW=256
    B, C, H, W = 2, 32, 16, 16
    reduction = 16
    hid = C // reduction

    key = jax.random.PRNGKey(0)
    ks = jax.random.split(key, 10)

    x = jax.random.normal(ks[0], (B, C, H, W), dtype=jnp.float32)

    params = {
        # ChannelGate MLP: Linear(C, hid) and Linear(hid, C), weights stored
        # pre-transposed as (in, out)
        "w1t": 0.2 * jax.random.normal(ks[1], (C, hid), jnp.float32),
        "b1": 0.1 * jax.random.normal(ks[2], (1, hid), jnp.float32),
        "w2t": 0.2 * jax.random.normal(ks[3], (hid, C), jnp.float32),
        "b2": 0.1 * jax.random.normal(ks[4], (1, C), jnp.float32),
        # SpatialGate: Conv2d(2, 1, kernel=7, padding=3, bias=False), OIHW
        "k_spatial": 0.1 * jax.random.normal(ks[5], (1, 2, 7, 7), jnp.float32),
        # BatchNorm2d(1) eval-mode parameters (running stats + affine)
        "bn_gamma": 1.0 + 0.1 * jax.random.normal(ks[6], (1,), jnp.float32),
        "bn_beta": 0.1 * jax.random.normal(ks[7], (1,), jnp.float32),
        "bn_mean": 0.05 * jax.random.normal(ks[8], (1,), jnp.float32),
        "bn_var": 0.5 + jax.random.uniform(ks[9], (1,), jnp.float32),
    }

    # Per-weight-update preprocessing, hoisted OUT of the jitted forward path.
    m_stacked, b_bn = precompute_spatial(params, H, W)
    m_stacked = jax.block_until_ready(m_stacked)

    out = cbam_forward(x, params["w1t"], params["b1"], params["w2t"],
                       params["b2"], m_stacked, b_bn)
    out = jax.block_until_ready(out)
    assert out.shape == (B, C, H, W), out.shape

    ref = reference_forward(x, params)
    assert jnp.allclose(out, ref, rtol=1e-4, atol=1e-4), "mismatch vs reference"

    print("KERNEL_OK")
</pallas_src>

<mosaic_0001>
module attributes {stable_mosaic.version = 11 : i64} {
  func.func @_cbam_kernel(%arg0: memref<2x32x256xf32, #tpu.memory_space<vmem>>, %arg1: memref<32x2xf32, #tpu.memory_space<vmem>>, %arg2: memref<1x2xf32, #tpu.memory_space<vmem>>, %arg3: memref<2x32xf32, #tpu.memory_space<vmem>>, %arg4: memref<1x32xf32, #tpu.memory_space<vmem>>, %arg5: memref<512x256xf32, #tpu.memory_space<vmem>>, %arg6: memref<1x1xf32, #tpu.memory_space<smem>>, %arg7: memref<2x32x256xf32, #tpu.memory_space<vmem>>) attributes {dimension_semantics = [], scalar_prefetch = 0 : i64, scratch_operands = 0 : i64, tpu.core_type = #tpu.core_type<tc>} {
    %c0 = arith.constant 0 : index
    %c0_0 = arith.constant 0 : index
    %c0_1 = arith.constant 0 : index
    %0 = vector.load %arg0[%c0, %c0_0, %c0_1] : memref<2x32x256xf32, #tpu.memory_space<vmem>>, vector<2x32x256xf32>
    %cst = arith.constant dense<0.000000e+00> : vector<2x32xf32>
    %1 = vector.multi_reduction <add>, %0, %cst [2] : vector<2x32x256xf32> to vector<2x32xf32>
    %cst_2 = arith.constant 2.560000e+02 : f32
    %2 = vector.broadcast %cst_2 : f32 to vector<2x32xf32>
    %3 = arith.divf %1, %2 : vector<2x32xf32>
    %cst_3 = arith.constant dense<0xFF800000> : vector<2x32xf32>
    %4 = vector.multi_reduction <maximumf>, %0, %cst_3 [2] : vector<2x32x256xf32> to vector<2x32xf32>
    %5 = tpu.concatenate %3, %4 in 0 : vector<2x32xf32>, vector<2x32xf32> -> vector<4x32xf32>
    %c0_4 = arith.constant 0 : index
    %c0_5 = arith.constant 0 : index
    %6 = vector.load %arg1[%c0_4, %c0_5] : memref<32x2xf32, #tpu.memory_space<vmem>>, vector<32x2xf32>
    %cst_6 = arith.constant dense<0.000000e+00> : vector<4x2xf32>
    %7 = tpu.matmul %5, %6, %cst_6 {dimension_numbers = #tpu.dot_dimension_numbers<[1], [0], [0], [1], [0, 0, 1, 1], [], []>} : vector<4x32xf32>, vector<32x2xf32>, vector<4x2xf32> -> vector<4x2xf32>
    %c0_7 = arith.constant 0 : index
    %c0_8 = arith.constant 0 : index
    %8 = vector.load %arg2[%c0_7, %c0_8] : memref<1x2xf32, #tpu.memory_space<vmem>>, vector<1x2xf32>
    %9 = vector.broadcast %8 : vector<1x2xf32> to vector<4x2xf32>
    %10 = arith.addf %7, %9 : vector<4x2xf32>
    %cst_9 = arith.constant 0.000000e+00 : f32
    %11 = vector.broadcast %cst_9 : f32 to vector<4x2xf32>
    %12 = arith.maximumf %10, %11 : vector<4x2xf32>
    %13 = vector.extract_strided_slice %12 {offsets = [0, 0], sizes = [2, 2], strides = [1, 1]} : vector<4x2xf32> to vector<2x2xf32>
    %14 = vector.extract_strided_slice %12 {offsets = [2, 0], sizes = [2, 2], strides = [1, 1]} : vector<4x2xf32> to vector<2x2xf32>
    %15 = arith.addf %13, %14 : vector<2x2xf32>
    %c0_10 = arith.constant 0 : index
    %c0_11 = arith.constant 0 : index
    %16 = vector.load %arg3[%c0_10, %c0_11] : memref<2x32xf32, #tpu.memory_space<vmem>>, vector<2x32xf32>
    %cst_12 = arith.constant dense<0.000000e+00> : vector<2x32xf32>
    %17 = tpu.matmul %15, %16, %cst_12 {dimension_numbers = #tpu.dot_dimension_numbers<[1], [0], [0], [1], [0, 0, 1, 1], [], []>} : vector<2x2xf32>, vector<2x32xf32>, vector<2x32xf32> -> vector<2x32xf32>
    %c0_13 = arith.constant 0 : index
    %c0_14 = arith.constant 0 : index
    %18 = vector.load %arg4[%c0_13, %c0_14] : memref<1x32xf32, #tpu.memory_space<vmem>>, vector<1x32xf32>
    %cst_15 = arith.constant 2.000000e+00 : f32
    %19 = vector.broadcast %cst_15 : f32 to vector<1x32xf32>
    %20 = arith.mulf %19, %18 : vector<1x32xf32>
    %21 = vector.broadcast %20 : vector<1x32xf32> to vector<2x32xf32>
    %22 = arith.addf %17, %21 : vector<2x32xf32>
    %cst_16 = arith.constant 0.000000e+00 : f32
    %23 = vector.broadcast %cst_16 : f32 to vector<2x32xf32>
    %24 = arith.subf %23, %22 : vector<2x32xf32>
    %25 = math.exp %24 : vector<2x32xf32>
    %cst_17 = arith.constant 1.000000e+00 : f32
    %26 = vector.broadcast %cst_17 : f32 to vector<2x32xf32>
    %27 = arith.addf %26, %25 : vector<2x32xf32>
    %cst_18 = arith.constant 1.000000e+00 : f32
    %28 = vector.broadcast %cst_18 : f32 to vector<2x32xf32>
    %29 = arith.divf %28, %27 : vector<2x32xf32>
    %30 = vector.shape_cast %29 : vector<2x32xf32> to vector<2x32x1xf32>
    %31 = vector.broadcast %30 : vector<2x32x1xf32> to vector<2x32x256xf32>
    %32 = arith.mulf %0, %31 : vector<2x32x256xf32>
    %c0_19 = arith.constant 0 : index
    %c0_20 = arith.constant 0 : index
    %c0_21 = arith.constant 0 : index
    %33 = vector.load %arg7[%c0_19, %c0_20, %c0_21] : memref<2x32x256xf32, #tpu.memory_space<vmem>>, vector<2x32x256xf32>
    tpu.vector_store %arg7[%c0_19, %c0_20, %c0_21], %32 {strides = array<i32>} : memref<2x32x256xf32, #tpu.memory_space<vmem>>, vector<2x32x256xf32>,
    %cst_22 = arith.constant dense<0xFF800000> : vector<2x256xf32>
    %34 = vector.multi_reduction <maximumf>, %32, %cst_22 [1] : vector<2x32x256xf32> to vector<2x256xf32>
    %cst_23 = arith.constant dense<0.000000e+00> : vector<2x256xf32>
    %35 = vector.multi_reduction <add>, %32, %cst_23 [1] : vector<2x32x256xf32> to vector<2x256xf32>
    %cst_24 = arith.constant 3.200000e+01 : f32
    %36 = vector.broadcast %cst_24 : f32 to vector<2x256xf32>
    %37 = arith.divf %35, %36 : vector<2x256xf32>
    %38 = tpu.concatenate %34, %37 in 1 : vector<2x256xf32>, vector<2x256xf32> -> vector<2x512xf32>
    %c0_25 = arith.constant 0 : index
    %c0_26 = arith.constant 0 : index
    %39 = vector.load %arg5[%c0_25, %c0_26] : memref<512x256xf32, #tpu.memory_space<vmem>>, vector<512x256xf32>
    %cst_27 = arith.constant dense<0.000000e+00> : vector<2x256xf32>
    %40 = tpu.matmul %38, %39, %cst_27 {dimension_numbers = #tpu.dot_dimension_numbers<[1], [0], [0], [1], [0, 0, 1, 1], [], []>} : vector<2x512xf32>, vector<512x256xf32>, vector<2x256xf32> -> vector<2x256xf32>
    %c0_28 = arith.constant 0 : index
    %c0_29 = arith.constant 0 : index
    %41 = memref.load %arg6[%c0_28, %c0_29] : memref<1x1xf32, #tpu.memory_space<smem>>
    %42 = vector.broadcast %41 : f32 to vector<2x256xf32>
    %43 = arith.addf %40, %42 : vector<2x256xf32>
    %c0_30 = arith.constant 0 : index
    %c0_31 = arith.constant 0 : index
    %c0_32 = arith.constant 0 : index
    %44 = vector.load %arg7[%c0_30, %c0_31, %c0_32] : memref<2x32x256xf32, #tpu.memory_space<vmem>>, vector<2x32x256xf32>
    %cst_33 = arith.constant 0.000000e+00 : f32
    %45 = vector.broadcast %cst_33 : f32 to vector<2x256xf32>
    %46 = arith.subf %45, %43 : vector<2x256xf32>
    %47 = math.exp %46 : vector<2x256xf32>
    %cst_34 = arith.constant 1.000000e+00 : f32
    %48 = vector.broadcast %cst_34 : f32 to vector<2x256xf32>
    %49 = arith.addf %48, %47 : vector<2x256xf32>
    %cst_35 = arith.constant 1.000000e+00 : f32
    %50 = vector.broadcast %cst_35 : f32 to vector<2x256xf32>
    %51 = arith.divf %50, %49 : vector<2x256xf32>
    %52 = vector.shape_cast %51 : vector<2x256xf32> to vector<2x1x256xf32>
    %53 = vector.broadcast %52 : vector<2x1x256xf32> to vector<2x32x256xf32>
    %54 = arith.mulf %44, %53 : vector<2x32x256xf32>
    %c0_36 = arith.constant 0 : index
    %c0_37 = arith.constant 0 : index
    %c0_38 = arith.constant 0 : index
    %55 = vector.load %arg7[%c0_36, %c0_37, %c0_38] : memref<2x32x256xf32, #tpu.memory_space<vmem>>, vector<2x32x256xf32>
    tpu.vector_store %arg7[%c0_36, %c0_37, %c0_38], %54 {strides = array<i32>} : memref<2x32x256xf32, #tpu.memory_space<vmem>>, vector<2x32x256xf32>,
    return
  }
}

</mosaic_0001>

<llo_original>
// kernel: cbam_forward.1
$region0: #{cbam_forward.1}
  #allocation0 [shape = 'u32[]', space=smem, size = 0x4, offset = 0x4, fixed_abs, tag = 'smem constant byte address 0x4 - core index']
  #allocation1 [shape = 'u32[144,128]{1,0:T(1,128)}', space=vmem, size = 0x12000, scoped, tag = 'internal scratch']
  #allocation2 [shape = 'f32[1,1]{1,0:T(1,128)S(6)}', space=smem, size = 0x200, scoped, tag = 'scoped memory for cbam_forward.1']
  %s0 = inlined_call_operand.vmem [shape: f32[2,32,256], index: 0, kind: input, shape index: {}]
  %s1 = inlined_call_operand.vmem [shape: f32[32,2], index: 1, kind: input, shape index: {}]
  %s2 = inlined_call_operand.vmem [shape: f32[1,2], index: 2, kind: input, shape index: {}]
  %s3 = inlined_call_operand.vmem [shape: f32[2,32], index: 3, kind: input, shape index: {}]
  %s4 = inlined_call_operand.vmem [shape: f32[1,32], index: 4, kind: input, shape index: {}]
  %s5 = inlined_call_operand.hbm [shape: f32[512,256], index: 5, kind: input, shape index: {}]
  %s6 = inlined_call_operand.<no memory space> [shape: f32[1,1], index: 6, kind: input, shape index: {}]
  %s7 = inlined_call_operand.vmem [shape: f32[2,32,256], index: 7, kind: output, shape index: {}]
  %s8 = sld [smem:[#allocation0]]
  $region42: #{cbam_forward.1} parent=0
    _
  %s10 = ssub.s32 1, %s8
  %s11 = scalar_select 0, %s10, %s8
  %12 = sst [smem:[#allocation2]] %s6
  $region1: #{cbam_forward.1} parent=0
    #allocation3 [shape = 'u8[524288]{0}', space=vmem, size = 0x80000, scoped, tag = 'input window, operand 5, single buffered']
    #allocation4 [shape = 's32[1]{0}', space=sflag, size = 0x4, scoped, tag = 'scoped memory for cbam_forward.1']
    %13 = vsyncpa [#allocation4], 0
    // Predicated region
    $region2: #{cbam_forward.1} parent=1 // pred_check
      _
    $region3: #{cbam_forward.1} parent=1 // pred_check_branch
      %15 = sbr.rel (0) target = $region5
    $region4: #{cbam_forward.1} parent=1 // pred_region
      _
    $region5: #{cbam_forward.1} parent=1 // pred_fallthru
      _
    // Predicated region
    $region6: #{cbam_forward.1} parent=1 // pred_check
      _
    $region7: #{cbam_forward.1} parent=1 // pred_check_branch
      %17 = sbr.rel (0) target = $region9
    $region8: #{cbam_forward.1} parent=1 // pred_region
      _
    $region9: #{cbam_forward.1} parent=1 // pred_fallthru
      _
    // Predicated region
    $region10: #{cbam_forward.1} parent=1 // pred_check
      _
    $region11: #{cbam_forward.1} parent=1 // pred_check_branch
      %19 = sbr.rel (0) target = $region13
    $region12: #{cbam_forward.1} parent=1 // pred_region
      _
    $region13: #{cbam_forward.1} parent=1 // pred_fallthru
      _
    // Predicated region
    $region14: #{cbam_forward.1} parent=1 // pred_check
      _
    $region15: #{cbam_forward.1} parent=1 // pred_check_branch
      %21 = sbr.rel (0) target = $region17
    $region16: #{cbam_forward.1} parent=1 // pred_region
      _
    $region17: #{cbam_forward.1} parent=1 // pred_fallthru
      _
    // Predicated region
    $region18: #{cbam_forward.1} parent=1 // pred_check
      _
    $region19: #{cbam_forward.1} parent=1 // pred_check_branch
      %23 = sbr.rel (0) target = $region21
    $region20: #{cbam_forward.1} parent=1 // pred_region
      _
    $region21: #{cbam_forward.1} parent=1 // pred_fallthru
      _
    // Predicated region
    $region22: #{cbam_forward.1} parent=1 // pred_check
      _
    $region23: #{cbam_forward.1} parent=1 // pred_check_branch
      %25 = sbr.rel (0) target = $region25
    $region24: #{cbam_forward.1} parent=1 // pred_region
      %s27 = ssub.s32 16384, 16384
      %28 = vsyncadd [#allocation4], %s27
      %s29 = sshll.u32 [#allocation3], 4
      %s30 = int_to_ptr.vmem [resolvable:$true] %s29
      %35 = dma.hbm_to_vmem [thread:$0]  %s5, 16384, %s30, [#allocation4], 256, 256, 16
    $region25: #{cbam_forward.1} parent=1 // pred_fallthru
      _
    // Predicated region
    $region26: #{cbam_forward.1} parent=1 // pred_check
      _
    $region27: #{cbam_forward.1} parent=1 // pred_check_branch
      %37 = sbr.rel (0) target = $region29
    $region28: #{cbam_forward.1} parent=1 // pred_region
      _
    $region29: #{cbam_forward.1} parent=1 // pred_fallthru
      _
    // Predicated region
    $region30: #{cbam_forward.1} parent=1 // pred_check
      _
    $region31: #{cbam_forward.1} parent=1 // pred_check_branch
      %39 = sbr.rel (0) target = $region33
    $region32: #{cbam_forward.1} parent=1 // pred_region
      %40 = dma.done [#allocation4], 16384
    $region33: #{cbam_forward.1} parent=1 // pred_fallthru
      _
    %v41 = vld [vmem:[%s0] sm:$0xff]
    %v42 = vld [vmem:[%s0 + $0x8] sm:$0xff]
    %v43 = vld [vmem:[%s0 + $0x10] sm:$0xff]
    %v44 = vld [vmem:[%s0 + $0x18] sm:$0xff]
    %v45 = vld [vmem:[%s0 + $0x20] sm:$0xff]
    %v46 = vld [vmem:[%s0 + $0x28] sm:$0xff]
    %v47 = vld [vmem:[%s0 + $0x30] sm:$0xff]
    %v48 = vld [vmem:[%s0 + $0x38] sm:$0xff]
    %v49 = vld [vmem:[%s0 + $0x40] sm:$0xff]
    %v50 = vld [vmem:[%s0 + $0x48] sm:$0xff]
    %v51 = vld [vmem:[%s0 + $0x50] sm:$0xff]
    %v52 = vld [vmem:[%s0 + $0x58] sm:$0xff]
    %v53 = vld [vmem:[%s0 + $0x60] sm:$0xff]
    %v54 = vld [vmem:[%s0 + $0x68] sm:$0xff]
    %v55 = vld [vmem:[%s0 + $0x70] sm:$0xff]
    %v56 = vld [vmem:[%s0 + $0x78] sm:$0xff]
    %v57 = vadd.f32 %v41, %v42
    %58 = vadd.xlane.f32.xlu0 %v57
    %v59 = vpop.xlane.xlu0 %58
    %v60 = vadd.f32 %v43, %v44
    %61 = vadd.xlane.f32.xlu0 %v60
    %v62 = vpop.xlane.xlu0 %61
    %v63 = vadd.f32 %v45, %v46
    %64 = vadd.xlane.f32.xlu0 %v63
    %v65 = vpop.xlane.xlu0 %64
    %v66 = vadd.f32 %v47, %v48
    %67 = vadd.xlane.f32.xlu0 %v66
    %v68 = vpop.xlane.xlu0 %67
    %v69 = vadd.f32 %v49, %v50
    %70 = vadd.xlane.f32.xlu0 %v69
    %v71 = vpop.xlane.xlu0 %70
    %v72 = vadd.f32 %v51, %v52
    %73 = vadd.xlane.f32.xlu0 %v72
    %v74 = vpop.xlane.xlu0 %73
    %v75 = vadd.f32 %v53, %v54
    %76 = vadd.xlane.f32.xlu0 %v75
    %v77 = vpop.xlane.xlu0 %76
    %v78 = vadd.f32 %v55, %v56
    %79 = vadd.xlane.f32.xlu0 %v78
    %v80 = vpop.xlane.xlu0 %79
    %v81 = vrcp.pop 256.0
    %v82 = vmul.f32 %v59, %v81
    %v83 = vmul.f32 %v62, %v81
    %v84 = vmul.f32 %v65, %v81
    %v85 = vmul.f32 %v68, %v81
    %v86 = vmul.f32 %v71, %v81
    %v87 = vmul.f32 %v74, %v81
    %v88 = vmul.f32 %v77, %v81
    %v89 = vmul.f32 %v80, %v81
    %v90 = vmax.f32 %v41, %v42
    %91 = vmax.xlane.f32.xlu0 %v90
    %v92 = vpop.xlane.xlu0 %91
    %v93 = vmax.f32 %v43, %v44
    %94 = vmax.xlane.f32.xlu0 %v93
    %v95 = vpop.xlane.xlu0 %94
    %v96 = vmax.f32 %v45, %v46
    %97 = vmax.xlane.f32.xlu0 %v96
    %v98 = vpop.xlane.xlu0 %97
    %v99 = vmax.f32 %v47, %v48
    %100 = vmax.xlane.f32.xlu0 %v99
    %v101 = vpop.xlane.xlu0 %100
    %v102 = vmax.f32 %v49, %v50
    %103 = vmax.xlane.f32.xlu0 %v102
    %v104 = vpop.xlane.xlu0 %103
    %v105 = vmax.f32 %v51, %v52
    %106 = vmax.xlane.f32.xlu0 %v105
    %v107 = vpop.xlane.xlu0 %106
    %v108 = vmax.f32 %v53, %v54
    %109 = vmax.xlane.f32.xlu0 %v108
    %v110 = vpop.xlane.xlu0 %109
    %v111 = vmax.f32 %v55, %v56
    %112 = vmax.xlane.f32.xlu0 %v111
    %v113 = vpop.xlane.xlu0 %112
    %v122 = vlaneseq
    %v123 = vand.u32 %v122, 127
    %v124 = vlaneseq
    %v125 = vshrl.u32 %v124, 7
    %v126 = vsub.s32 %v123, %v125
    %v127 = vrot.slane %v82, %v126
    %v128 = vadd.s32 %v123, 4294967288
    %v129 = vlaneseq
    %v130 = vshrl.u32 %v129, 7
    %v131 = vsub.s32 %v128, %v130
    %v132 = vrot.slane %v83, %v131
    %vm133 = vcmask 130112
    %v134 = vsel %vm133, %v132, %v127
    %v135 = vadd.s32 %v123, 4294967280
    %v136 = vlaneseq
    %v137 = vshrl.u32 %v136, 7
    %v138 = vsub.s32 %v135, %v137
    %v139 = vrot.slane %v84, %v138
    %vm140 = vcmask 195712
    %v141 = vsel %vm140, %v139, %v134
    %v142 = vadd.s32 %v123, 4294967272
    %v143 = vlaneseq
    %v144 = vshrl.u32 %v143, 7
    %v145 = vsub.s32 %v142, %v144
    %v146 = vrot.slane %v85, %v145
    %vm147 = vcmask 261312
    %v148 = vsel %vm147, %v146, %v141
    %v149 = vlaneseq
    %v150 = vshrl.u32 %v149, 7
    %v151 = vsub.s32 %v123, %v150
    %v152 = vrot.slane %v86, %v151
    %v153 = vlaneseq
    %v154 = vshrl.u32 %v153, 7
    %v155 = vsub.s32 %v128, %v154
    %v156 = vrot.slane %v87, %v155
    %v157 = vsel %vm133, %v156, %v152
    %v158 = vlaneseq
    %v159 = vshrl.u32 %v158, 7
    %v160 = vsub.s32 %v135, %v159
    %v161 = vrot.slane %v88, %v160
    %v162 = vsel %vm140, %v161, %v157
    %v163 = vlaneseq
    %v164 = vshrl.u32 %v163, 7
    %v165 = vsub.s32 %v142, %v164
    %v166 = vrot.slane %v89, %v165
    %v167 = vsel %vm147, %v166, %v162
    %vm168 = vcmask 1041409
    %v169 = vsel %vm168, %v167, %v148
    %v179 = vlaneseq
    %v180 = vshrl.u32 %v179, 7
    %v181 = vsub.s32 %v123, %v180
    %v182 = vrot.slane %v92, %v181
    %v183 = vlaneseq
    %v184 = vshrl.u32 %v183, 7
    %v185 = vsub.s32 %v128, %v184
    %v186 = vrot.slane %v95, %v185
    %v187 = vsel %vm133, %v186, %v182
    %v188 = vlaneseq
    %v189 = vshrl.u32 %v188, 7
    %v190 = vsub.s32 %v135, %v189
    %v191 = vrot.slane %v98, %v190
    %v192 = vsel %vm140, %v191, %v187
    %v193 = vlaneseq
    %v194 = vshrl.u32 %v193, 7
    %v195 = vsub.s32 %v142, %v194
    %v196 = vrot.slane %v101, %v195
    %v197 = vsel %vm147, %v196, %v192
    %v198 = vlaneseq
    %v199 = vshrl.u32 %v198, 7
    %v200 = vsub.s32 %v123, %v199
    %v201 = vrot.slane %v104, %v200
    %v202 = vlaneseq
    %v203 = vshrl.u32 %v202, 7
    %v204 = vsub.s32 %v128, %v203
    %v205 = vrot.slane %v107, %v204
    %v206 = vsel %vm133, %v205, %v201
    %v207 = vlaneseq
    %v208 = vshrl.u32 %v207, 7
    %v209 = vsub.s32 %v135, %v208
    %v210 = vrot.slane %v110, %v209
    %v211 = vsel %vm140, %v210, %v206
    %v212 = vlaneseq
    %v213 = vshrl.u32 %v212, 7
    %v214 = vsub.s32 %v142, %v213
    %v215 = vrot.slane %v113, %v214
    %v216 = vsel %vm147, %v215, %v211
    %vm217 = vcmask 1043459
    %v218 = vsel %vm217, %v216, %v197
    %vm220 = vcmask 1041408
    %v221 = vsel %vm220, %v169, %v218
    %v222 = vld [vmem:[%s1] sm:$0xff]
    %v223 = vld [vmem:[%s1 + $0x8] sm:$0xff]
    %v224 = vld [vmem:[%s1 + $0x10] sm:$0xff]
    %v225 = vld [vmem:[%s1 + $0x18] sm:$0xff]
    %v226 = vld [vmem:[%s2] sm:$0x1]
    %v228 = vlaneseq
    %v229 = vshrl.u32 %v228, 7
    %v230 = vsub.s32 0, %v229
    %v231 = vrot.slane %v226, %v230
    %vm233 = vcmask 261120
    %v235 = vsel %vm233, %v221, 0
    %237 = vmatprep.subr.mxu0 0.0
    %238 = vmatpush1.msra.mxu0 %v222
    %239 = vmatprep.subr.mxu0 0.0
    %240 = vmatpush1.msra.mxu0 %v223
    %241 = vmatprep.subr.mxu0 0.0
    %242 = vmatpush1.msra.mxu0 %v224
    %243 = vmatprep.subr.mxu0 0.0
    %244 = vmatpush1.msra.mxu0 %v225
    %245 = vmatprep.subr.mxu0 0.0
    %246 = vmatpush1.msra.mxu0 0.0
    %247 = vmatprep.subr.mxu0 0.0
    %248 = vmatpush1.msra.mxu0 0.0
    %249 = vmatprep.subr.mxu0 0.0
    %250 = vmatpush1.msra.mxu0 0.0
    %251 = vmatprep.subr.mxu0 0.0
    %252 = vmatpush1.msra.mxu0 0.0
    %253 = vmatprep.subr.mxu0 0.0
    %254 = vmatpush1.msra.mxu0 0.0
    %255 = vmatprep.subr.mxu0 0.0
    %256 = vmatpush1.msra.mxu0 0.0
    %257 = vmatprep.subr.mxu0 0.0
    %258 = vmatpush1.msra.mxu0 0.0
    %259 = vmatprep.subr.mxu0 0.0
    %260 = vmatpush1.msra.mxu0 0.0
    %261 = vmatprep.subr.mxu0 0.0
    %262 = vmatpush1.msra.mxu0 0.0
    %263 = vmatprep.subr.mxu0 0.0
    %264 = vmatpush1.msra.mxu0 0.0
    %265 = vmatprep.subr.mxu0 0.0
    %266 = vmatpush1.msra.mxu0 0.0
    %267 = vmatprep.subr.mxu0 0.0
    %268 = vmatpush1.msra.mxu0 0.0
    %269 = vmatprep.subr.mxu0 0.0
    %270 = vmatpush1.msra.mxu0 0.0
    %271 = vmatprep.subr.mxu0 0.0
    %272 = vmatpush1.msra.mxu0 0.0
    %273 = vmatprep.subr.mxu0 0.0
    %274 = vmatpush1.msra.mxu0 0.0
    %275 = vmatprep.subr.mxu0 0.0
    %276 = vmatpush1.msra.mxu0 0.0
    %277 = vmatprep.subr.mxu0 0.0
    %278 = vmatpush1.msra.mxu0 0.0
    %279 = vmatprep.subr.mxu0 0.0
    %280 = vmatpush1.msra.mxu0 0.0
    %281 = vmatprep.subr.mxu0 0.0
    %282 = vmatpush1.msra.mxu0 0.0
    %283 = vmatprep.subr.mxu0 0.0
    %284 = vmatpush1.msra.mxu0 0.0
    %285 = vmatprep.subr.mxu0 0.0
    %286 = vmatpush1.msra.mxu0 0.0
    %287 = vmatprep.subr.mxu0 0.0
    %288 = vmatpush1.msra.mxu0 0.0
    %289 = vmatprep.subr.mxu0 0.0
    %290 = vmatpush1.msra.mxu0 0.0
    %291 = vmatprep.subr.mxu0 0.0
    %292 = vmatpush1.msra.mxu0 0.0
    %293 = vmatprep.subr.mxu0 0.0
    %294 = vmatpush1.msra.mxu0 0.0
    %295 = vmatprep.subr.mxu0 0.0
    %296 = vmatpush1.msra.mxu0 0.0
    %297 = vmatprep.subr.mxu0 0.0
    %298 = vmatpush1.msra.mxu0 0.0
    %299 = vmatprep.subr.mxu0 0.0
    %300 = vmatpush1.msra.mxu0 0.0
    %301 = vmatprep.mubr.f32.mxu0 0.0
    %302 = vmatmul.mubr.f32.gmra.mrb[0].mxu0 %v235
    %v303 = vpop.f32.mrb[0].mxu0
    %v304 = vadd.f32 %v231, %v303
    %v305 = vpop.f32.mrb[0].mxu0
    %306 = vdwg.mxu0
    %v307 = vmax.f32 %v304, 0.0
    %v309 = vrot.slane %v307, 2
    %v311 = vadd.f32 %v307, %v309
    %v312 = vld [vmem:[%s3] sm:$0x3]
    %v313 = vld [vmem:[%s4] sm:$0x1]
    %v314 = vmul.f32 %v313, 2.0
    %v316 = vlaneseq
    %v317 = vshrl.u32 %v316, 7
    %v318 = vsub.s32 0, %v317
    %v319 = vrot.slane %v314, %v318
    %vm321 = vcmask 15360
    %v323 = vsel %vm321, %v311, 0
    %v326 = vsel %vm220, %v312, 0
    %328 = vmatprep.subr.mxu0 0.0
    %329 = vmatpush1.msra.mxu0 %v326
    %330 = vmatprep.subr.mxu0 0.0
    %331 = vmatpush1.msra.mxu0 0.0
    %332 = vmatprep.subr.mxu0 0.0
    %333 = vmatpush1.msra.mxu0 0.0
    %334 = vmatprep.subr.mxu0 0.0
    %335 = vmatpush1.msra.mxu0 0.0
    %336 = vmatprep.subr.mxu0 0.0
    %337 = vmatpush1.msra.mxu0 0.0
    %338 = vmatprep.subr.mxu0 0.0
    %339 = vmatpush1.msra.mxu0 0.0
    %340 = vmatprep.subr.mxu0 0.0
    %341 = vmatpush1.msra.mxu0 0.0
    %342 = vmatprep.subr.mxu0 0.0
    %343 = vmatpush1.msra.mxu0 0.0
    %344 = vmatprep.subr.mxu0 0.0
    %345 = vmatpush1.msra.mxu0 0.0
    %346 = vmatprep.subr.mxu0 0.0
    %347 = vmatpush1.msra.mxu0 0.0
    %348 = vmatprep.subr.mxu0 0.0
    %349 = vmatpush1.msra.mxu0 0.0
    %350 = vmatprep.subr.mxu0 0.0
    %351 = vmatpush1.msra.mxu0 0.0
    %352 = vmatprep.subr.mxu0 0.0
    %353 = vmatpush1.msra.mxu0 0.0
    %354 = vmatprep.subr.mxu0 0.0
    %355 = vmatpush1.msra.mxu0 0.0
    %356 = vmatprep.subr.mxu0 0.0
    %357 = vmatpush1.msra.mxu0 0.0
    %358 = vmatprep.subr.mxu0 0.0
    %359 = vmatpush1.msra.mxu0 0.0
    %360 = vmatprep.subr.mxu0 0.0
    %361 = vmatpush1.msra.mxu0 0.0
    %362 = vmatprep.subr.mxu0 0.0
    %363 = vmatpush1.msra.mxu0 0.0
    %364 = vmatprep.subr.mxu0 0.0
    %365 = vmatpush1.msra.mxu0 0.0
    %366 = vmatprep.subr.mxu0 0.0
    %367 = vmatpush1.msra.mxu0 0.0
    %368 = vmatprep.subr.mxu0 0.0
    %369 = vmatpush1.msra.mxu0 0.0
    %370 = vmatprep.subr.mxu0 0.0
    %371 = vmatpush1.msra.mxu0 0.0
    %372 = vmatprep.subr.mxu0 0.0
    %373 = vmatpush1.msra.mxu0 0.0
    %374 = vmatprep.subr.mxu0 0.0
    %375 = vmatpush1.msra.mxu0 0.0
    %376 = vmatprep.subr.mxu0 0.0
    %377 = vmatpush1.msra.mxu0 0.0
    %378 = vmatprep.subr.mxu0 0.0
    %379 = vmatpush1.msra.mxu0 0.0
    %380 = vmatprep.subr.mxu0 0.0
    %381 = vmatpush1.msra.mxu0 0.0
    %382 = vmatprep.subr.mxu0 0.0
    %383 = vmatpush1.msra.mxu0 0.0
    %384 = vmatprep.subr.mxu0 0.0
    %385 = vmatpush1.msra.mxu0 0.0
    %386 = vmatprep.subr.mxu0 0.0
    %387 = vmatpush1.msra.mxu0 0.0
    %388 = vmatprep.subr.mxu0 0.0
    %389 = vmatpush1.msra.mxu0 0.0
    %390 = vmatprep.subr.mxu0 0.0
    %391 = vmatpush1.msra.mxu0 0.0
    %392 = vmatprep.mubr.f32.mxu0 0.0
    %393 = vmatmul.mubr.f32.gmra.mrb[0].mxu0 %v323
    %v394 = vpop.f32.mrb[0].mxu0
    %v395 = vadd.f32 %v319, %v394
    %v396 = vpop.f32.mrb[0].mxu0
    %397 = vdwg.mxu0
    %v398 = vsub.f32 0.0, %v395
    %v399 = vmul.f32 %v398, 1.442695
    %v400 = vpow.pop %v399
    %v401 = vadd.f32 %v400, 1.0
    %v402 = vrcp.pop %v401
    %v403 = vmul.f32 1.0, %v402
    %v404 = vlaneseq
    %v405 = vshrl.u32 %v404, 7
    %v406 = vsub.s32 0, %v405
    %v407 = vrot.slane %v403, %v406
    %409 = vbcast.lane.b32.xlu0 %v407, 256
    %v410 = vpop.permute.xlu0 %409
    %s412 = sor.u32 256, 8
    %413 = vbcast.lane.b32.xlu0 %v407, %s412
    %v414 = vpop.permute.xlu0 %413
    %s416 = sor.u32 256, 16
    %417 = vbcast.lane.b32.xlu0 %v407, %s416
    %v418 = vpop.permute.xlu0 %417
    %s420 = sor.u32 256, 24
    %421 = vbcast.lane.b32.xlu0 %v407, %s420
    %v422 = vpop.permute.xlu0 %421
    %v423 = vlaneseq
    %v424 = vshrl.u32 %v423, 7
    %v425 = vsub.s32 1, %v424
    %v426 = vrot.slane %v403, %v425
    %428 = vbcast.lane.b32.xlu0 %v426, 256
    %v429 = vpop.permute.xlu0 %428
    %s431 = sor.u32 256, 8
    %432 = vbcast.lane.b32.xlu0 %v426, %s431
    %v433 = vpop.permute.xlu0 %432
    %s435 = sor.u32 256, 16
    %436 = vbcast.lane.b32.xlu0 %v426, %s435
    %v437 = vpop.permute.xlu0 %436
    %s439 = sor.u32 256, 24
    %440 = vbcast.lane.b32.xlu0 %v426, %s439
    %v441 = vpop.permute.xlu0 %440
    %v442 = vmul.f32 %v41, %v410
    %v443 = vmul.f32 %v42, %v410
    %v444 = vmul.f32 %v43, %v414
    %v445 = vmul.f32 %v44, %v414
    %v446 = vmul.f32 %v45, %v418
    %v447 = vmul.f32 %v46, %v418
    %v448 = vmul.f32 %v47, %v422
    %v449 = vmul.f32 %v48, %v422
    %v450 = vmul.f32 %v49, %v429
    %v451 = vmul.f32 %v50, %v429
    %v452 = vmul.f32 %v51, %v433
    %v453 = vmul.f32 %v52, %v433
    %v454 = vmul.f32 %v53, %v437
    %v455 = vmul.f32 %v54, %v437
    %v456 = vmul.f32 %v55, %v441
    %v457 = vmul.f32 %v56, %v441
    %458 = vst [vmem:[%s7] sm:$0xff] %v442
    %459 = vst [vmem:[%s7 + $0x8] sm:$0xff] %v443
    %460 = vst [vmem:[%s7 + $0x10] sm:$0xff] %v444
    %461 = vst [vmem:[%s7 + $0x18] sm:$0xff] %v445
    %462 = vst [vmem:[%s7 + $0x20] sm:$0xff] %v446
    %463 = vst [vmem:[%s7 + $0x28] sm:$0xff] %v447
    %464 = vst [vmem:[%s7 + $0x30] sm:$0xff] %v448
    %465 = vst [vmem:[%s7 + $0x38] sm:$0xff] %v449
    %466 = vst [vmem:[%s7 + $0x40] sm:$0xff] %v450
    %467 = vst [vmem:[%s7 + $0x48] sm:$0xff] %v451
    %468 = vst [vmem:[%s7 + $0x50] sm:$0xff] %v452
    %469 = vst [vmem:[%s7 + $0x58] sm:$0xff] %v453
    %470 = vst [vmem:[%s7 + $0x60] sm:$0xff] %v454
    %471 = vst [vmem:[%s7 + $0x68] sm:$0xff] %v455
    %472 = vst [vmem:[%s7 + $0x70] sm:$0xff] %v456
    %473 = vst [vmem:[%s7 + $0x78] sm:$0xff] %v457
    %v474 = vmax.f32 %v442, %v444
    %v475 = vmax.f32 %v474, %v446
    %v476 = vmax.f32 %v475, %v448
    %v477 = vrot.slane %v476, 4
    %v478 = vmax.f32 %v476, %v477
    %v479 = vrot.slane %v478, 2
    %v480 = vmax.f32 %v478, %v479
    %v481 = vrot.slane %v480, 1
    %v482 = vmax.f32 %v480, %v481
    %v483 = vmax.f32 %v443, %v445
    %v484 = vmax.f32 %v483, %v447
    %v485 = vmax.f32 %v484, %v449
    %v486 = vrot.slane %v485, 4
    %v487 = vmax.f32 %v485, %v486
    %v488 = vrot.slane %v487, 2
    %v489 = vmax.f32 %v487, %v488
    %v490 = vrot.slane %v489, 1
    %v491 = vmax.f32 %v489, %v490
    %v492 = vmax.f32 %v450, %v452
    %v493 = vmax.f32 %v492, %v454
    %v494 = vmax.f32 %v493, %v456
    %v495 = vrot.slane %v494, 4
    %v496 = vmax.f32 %v494, %v495
    %v497 = vrot.slane %v496, 2
    %v498 = vmax.f32 %v496, %v497
    %v499 = vrot.slane %v498, 1
    %v500 = vmax.f32 %v498, %v499
    %v501 = vmax.f32 %v451, %v453
    %v502 = vmax.f32 %v501, %v455
    %v503 = vmax.f32 %v502, %v457
    %v504 = vrot.slane %v503, 4
    %v505 = vmax.f32 %v503, %v504
    %v506 = vrot.slane %v505, 2
    %v507 = vmax.f32 %v505, %v506
    %v508 = vrot.slane %v507, 1
    %v509 = vmax.f32 %v507, %v508
    %v510 = vadd.f32 %v442, %v444
    %v511 = vadd.f32 %v510, %v446
    %v512 = vadd.f32 %v511, %v448
    %v513 = vrot.slane %v512, 4
    %v514 = vadd.f32 %v512, %v513
    %v515 = vrot.slane %v514, 2
    %v516 = vadd.f32 %v514, %v515
    %v517 = vrot.slane %v516, 1
    %v518 = vadd.f32 %v516, %v517
    %v519 = vadd.f32 %v443, %v445
    %v520 = vadd.f32 %v519, %v447
    %v521 = vadd.f32 %v520, %v449
    %v522 = vrot.slane %v521, 4
    %v523 = vadd.f32 %v521, %v522
    %v524 = vrot.slane %v523, 2
    %v525 = vadd.f32 %v523, %v524
    %v526 = vrot.slane %v525, 1
    %v527 = vadd.f32 %v525, %v526
    %v528 = vadd.f32 %v450, %v452
    %v529 = vadd.f32 %v528, %v454
    %v530 = vadd.f32 %v529, %v456
    %v531 = vrot.slane %v530, 4
    %v532 = vadd.f32 %v530, %v531
    %v533 = vrot.slane %v532, 2
    %v534 = vadd.f32 %v532, %v533
    %v535 = vrot.slane %v534, 1
    %v536 = vadd.f32 %v534, %v535
    %v537 = vadd.f32 %v451, %v453
    %v538 = vadd.f32 %v537, %v455
    %v539 = vadd.f32 %v538, %v457
    %v540 = vrot.slane %v539, 4
    %v541 = vadd.f32 %v539, %v540
    %v542 = vrot.slane %v541, 2
    %v543 = vadd.f32 %v541, %v542
    %v544 = vrot.slane %v543, 1
    %v545 = vadd.f32 %v543, %v544
    %v546 = vrcp.pop 32.0
    %v547 = vmul.f32 %v518, %v546
    %v548 = vmul.f32 %v527, %v546
    %v549 = vmul.f32 %v536, %v546
    %v550 = vmul.f32 %v545, %v546
    %v555 = vsel %vm168, %v500, %v482
    %v556 = vsel %vm168, %v509, %v491
    %v563 = vsel %vm168, %v549, %v547
    %v564 = vsel %vm168, %v550, %v548
    %v567 = vld [vmem:[#allocation3] sm:$0xff]
    %v568 = vld [vmem:[#allocation3 + $0x8] sm:$0xff]
    %v569 = vld [vmem:[#allocation3 + $0x10] sm:$0xff]
    %v570 = vld [vmem:[#allocation3 + $0x18] sm:$0xff]
    %v571 = vld [vmem:[#allocation3 + $0x20] sm:$0xff]
    %v572 = vld [vmem:[#allocation3 + $0x28] sm:$0xff]
    %v573 = vld [vmem:[#allocation3 + $0x30] sm:$0xff]
    %v574 = vld [vmem:[#allocation3 + $0x38] sm:$0xff]
    %v575 = vld [vmem:[#allocation3 + $0x40] sm:$0xff]
    %v576 = vld [vmem:[#allocation3 + $0x48] sm:$0xff]
    %v577 = vld [vmem:[#allocation3 + $0x50] sm:$0xff]
    %v578 = vld [vmem:[#allocation3 + $0x58] sm:$0xff]
    %v579 = vld [vmem:[#allocation3 + $0x60] sm:$0xff]
    %v580 = vld [vmem:[#allocation3 + $0x68] sm:$0xff]
    %v581 = vld [vmem:[#allocation3 + $0x70] sm:$0xff]
    %v582 = vld [vmem:[#allocation3 + $0x78] sm:$0xff]
    %v583 = vld [vmem:[#allocation3 + $0x80] sm:$0xff]
    %v584 = vld [vmem:[#allocation3 + $0x88] sm:$0xff]
    %v585 = vld [vmem:[#allocation3 + $0x90] sm:$0xff]
    %v586 = vld [vmem:[#allocation3 + $0x98] sm:$0xff]
    %v587 = vld [vmem:[#allocation3 + $0xa0] sm:$0xff]
    %v588 = vld [vmem:[#allocation3 + $0xa8] sm:$0xff]
    %v589 = vld [vmem:[#allocation3 + $0xb0] sm:$0xff]
    %v590 = vld [vmem:[#allocation3 + $0xb8] sm:$0xff]
    %v591 = vld [vmem:[#allocation3 + $0xc0] sm:$0xff]
    %v592 = vld [vmem:[#allocation3 + $0xc8] sm:$0xff]
    %v593 = vld [vmem:[#allocation3 + $0xd0] sm:$0xff]
    %v594 = vld [vmem:[#allocation3 + $0xd8] sm:$0xff]
    %v595 = vld [vmem:[#allocation3 + $0xe0] sm:$0xff]
    %v596 = vld [vmem:[#allocation3 + $0xe8] sm:$0xff]
    %v597 = vld [vmem:[#allocation3 + $0xf0] sm:$0xff]
    %v598 = vld [vmem:[#allocation3 + $0xf8] sm:$0xff]
    %v599 = vld [vmem:[#allocation3 + $0x100] sm:$0xff]
    %v600 = vld [vmem:[#allocation3 + $0x108] sm:$0xff]
    %v601 = vld [vmem:[#allocation3 + $0x110] sm:$0xff]
    %v602 = vld [vmem:[#allocation3 + $0x118] sm:$0xff]
    %v603 = vld [vmem:[#allocation3 + $0x120] sm:$0xff]
    %v604 = vld [vmem:[#allocation3 + $0x128] sm:$0xff]
    %v605 = vld [vmem:[#allocation3 + $0x130] sm:$0xff]
    %v606 = vld [vmem:[#allocation3 + $0x138] sm:$0xff]
    %v607 = vld [vmem:[#allocation3 + $0x140] sm:$0xff]
    %v608 = vld [vmem:[#allocation3 + $0x148] sm:$0xff]
    %v609 = vld [vmem:[#allocation3 + $0x150] sm:$0xff]
    %v610 = vld [vmem:[#allocation3 + $0x158] sm:$0xff]
    %v611 = vld [vmem:[#allocation3 + $0x160] sm:$0xff]
    %v612 = vld [vmem:[#allocation3 + $0x168] sm:$0xff]
    %v613 = vld [vmem:[#allocation3 + $0x170] sm:$0xff]
    %v614 = vld [vmem:[#allocation3 + $0x178] sm:$0xff]
    %v615 = vld [vmem:[#allocation3 + $0x180] sm:$0xff]
    %v616 = vld [vmem:[#allocation3 + $0x188] sm:$0xff]
    %v617 = vld [vmem:[#allocation3 + $0x190] sm:$0xff]
    %v618 = vld [vmem:[#allocation3 + $0x198] sm:$0xff]
    %v619 = vld [vmem:[#allocation3 + $0x1a0] sm:$0xff]
    %v620 = vld [vmem:[#allocation3 + $0x1a8] sm:$0xff]
    %v621 = vld [vmem:[#allocation3 + $0x1b0] sm:$0xff]
    %v622 = vld [vmem:[#allocation3 + $0x1b8] sm:$0xff]
    %v623 = vld [vmem:[#allocation3 + $0x1c0] sm:$0xff]
    %v624 = vld [vmem:[#allocation3 + $0x1c8] sm:$0xff]
    %v625 = vld [vmem:[#allocation3 + $0x1d0] sm:$0xff]
    %v626 = vld [vmem:[#allocation3 + $0x1d8] sm:$0xff]
    %v627 = vld [vmem:[#allocation3 + $0x1e0] sm:$0xff]
    %v628 = vld [vmem:[#allocation3 + $0x1e8] sm:$0xff]
    %v629 = vld [vmem:[#allocation3 + $0x1f0] sm:$0xff]
    %v630 = vld [vmem:[#allocation3 + $0x1f8] sm:$0xff]
    %v631 = vld [vmem:[#allocation3 + $0x200] sm:$0xff]
    %v632 = vld [vmem:[#allocation3 + $0x208] sm:$0xff]
    %v633 = vld [vmem:[#allocation3 + $0x210] sm:$0xff]
    %v634 = vld [vmem:[#allocation3 + $0x218] sm:$0xff]
    %v635 = vld [vmem:[#allocation3 + $0x220] sm:$0xff]
    %v636 = vld [vmem:[#allocation3 + $0x228] sm:$0xff]
    %v637 = vld [vmem:[#allocation3 + $0x230] sm:$0xff]
    %v638 = vld [vmem:[#allocation3 + $0x238] sm:$0xff]
    %v639 = vld [vmem:[#allocation3 + $0x240] sm:$0xff]
    %v640 = vld [vmem:[#allocation3 + $0x248] sm:$0xff]
    %v641 = vld [vmem:[#allocation3 + $0x250] sm:$0xff]
    %v642 = vld [vmem:[#allocation3 + $0x258] sm:$0xff]
    %v643 = vld [vmem:[#allocation3 + $0x260] sm:$0xff]
    %v644 = vld [vmem:[#allocation3 + $0x268] sm:$0xff]
    %v645 = vld [vmem:[#allocation3 + $0x270] sm:$0xff]
    %v646 = vld [vmem:[#allocation3 + $0x278] sm:$0xff]
    %v647 = vld [vmem:[#allocation3 + $0x280] sm:$0xff]
    %v648 = vld [vmem:[#allocation3 + $0x288] sm:$0xff]
    %v649 = vld [vmem:[#allocation3 + $0x290] sm:$0xff]
    %v650 = vld [vmem:[#allocation3 + $0x298] sm:$0xff]
    %v651 = vld [vmem:[#allocation3 + $0x2a0] sm:$0xff]
    %v652 = vld [vmem:[#allocation3 + $0x2a8] sm:$0xff]
    %v653 = vld [vmem:[#allocation3 + $0x2b0] sm:$0xff]
    %v654 = vld [vmem:[#allocation3 + $0x2b8] sm:$0xff]
    %v655 = vld [vmem:[#allocation3 + $0x2c0] sm:$0xff]
    %v656 = vld [vmem:[#allocation3 + $0x2c8] sm:$0xff]
    %v657 = vld [vmem:[#allocation3 + $0x2d0] sm:$0xff]
    %v658 = vld [vmem:[#allocation3 + $0x2d8] sm:$0xff]
    %v659 = vld [vmem:[#allocation3 + $0x2e0] sm:$0xff]
    %v660 = vld [vmem:[#allocation3 + $0x2e8] sm:$0xff]
    %v661 = vld [vmem:[#allocation3 + $0x2f0] sm:$0xff]
    %v662 = vld [vmem:[#allocation3 + $0x2f8] sm:$0xff]
    %v663 = vld [vmem:[#allocation3 + $0x300] sm:$0xff]
    %v664 = vld [vmem:[#allocation3 + $0x308] sm:$0xff]
    %v665 = vld [vmem:[#allocation3 + $0x310] sm:$0xff]
    %v666 = vld [vmem:[#allocation3 + $0x318] sm:$0xff]
    %v667 = vld [vmem:[#allocation3 + $0x320] sm:$0xff]
    %v668 = vld [vmem:[#allocation3 + $0x328] sm:$0xff]
    %v669 = vld [vmem:[#allocation3 + $0x330] sm:$0xff]
    %v670 = vld [vmem:[#allocation3 + $0x338] sm:$0xff]
    %v671 = vld [vmem:[#allocation3 + $0x340] sm:$0xff]
    %v672 = vld [vmem:[#allocation3 + $0x348] sm:$0xff]
    %v673 = vld [vmem:[#allocation3 + $0x350] sm:$0xff]
    %v674 = vld [vmem:[#allocation3 + $0x358] sm:$0xff]
    %v675 = vld [vmem:[#allocation3 + $0x360] sm:$0xff]
    %v676 = vld [vmem:[#allocation3 + $0x368] sm:$0xff]
    %v677 = vld [vmem:[#allocation3 + $0x370] sm:$0xff]
    %v678 = vld [vmem:[#allocation3 + $0x378] sm:$0xff]
    %v679 = vld [vmem:[#allocation3 + $0x380] sm:$0xff]
    %v680 = vld [vmem:[#allocation3 + $0x388] sm:$0xff]
    %v681 = vld [vmem:[#allocation3 + $0x390] sm:$0xff]
    %v682 = vld [vmem:[#allocation3 + $0x398] sm:$0xff]
    %v683 = vld [vmem:[#allocation3 + $0x3a0] sm:$0xff]
    %v684 = vld [vmem:[#allocation3 + $0x3a8] sm:$0xff]
    %v685 = vld [vmem:[#allocation3 + $0x3b0] sm:$0xff]
    %v686 = vld [vmem:[#allocation3 + $0x3b8] sm:$0xff]
    %v687 = vld [vmem:[#allocation3 + $0x3c0] sm:$0xff]
    %v688 = vld [vmem:[#allocation3 + $0x3c8] sm:$0xff]
    %v689 = vld [vmem:[#allocation3 + $0x3d0] sm:$0xff]
    %v690 = vld [vmem:[#allocation3 + $0x3d8] sm:$0xff]
    %v691 = vld [vmem:[#allocation3 + $0x3e0] sm:$0xff]
    %v692 = vld [vmem:[#allocation3 + $0x3e8] sm:$0xff]
    %v693 = vld [vmem:[#allocation3 + $0x3f0] sm:$0xff]
    %v694 = vld [vmem:[#allocation3 + $0x3f8] sm:$0xff]
    %s695 = sld [smem:[#allocation2]]
    %v696 = vstv %s695
    %697 = vmatprep.subr.mxu0 %v568
    %698 = vmatpush1.msra.mxu0 %v567
    %699 = vmatprep.subr.mxu0 %v570
    %700 = vmatpush1.msra.mxu0 %v569
    %701 = vmatprep.subr.mxu0 %v572
    %702 = vmatpush1.msra.mxu0 %v571
    %703 = vmatprep.subr.mxu0 %v574
    %704 = vmatpush1.msra.mxu0 %v573
    %705 = vmatprep.subr.mxu0 %v576
    %706 = vmatpush1.msra.mxu0 %v575
    %707 = vmatprep.subr.mxu0 %v578
    %708 = vmatpush1.msra.mxu0 %v577
    %709 = vmatprep.subr.mxu0 %v580
    %710 = vmatpush1.msra.mxu0 %v579
    %711 = vmatprep.subr.mxu0 %v582
    %712 = vmatpush1.msra.mxu0 %v581
    %713 = vmatprep.subr.mxu0 %v584
    %714 = vmatpush1.msra.mxu0 %v583
    %715 = vmatprep.subr.mxu0 %v586
    %716 = vmatpush1.msra.mxu0 %v585
    %717 = vmatprep.subr.mxu0 %v588
    %718 = vmatpush1.msra.mxu0 %v587
    %719 = vmatprep.subr.mxu0 %v590
    %720 = vmatpush1.msra.mxu0 %v589
    %721 = vmatprep.subr.mxu0 %v592
    %722 = vmatpush1.msra.mxu0 %v591
    %723 = vmatprep.subr.mxu0 %v594
    %724 = vmatpush1.msra.mxu0 %v593
    %725 = vmatprep.subr.mxu0 %v596
    %726 = vmatpush1.msra.mxu0 %v595
    %727 = vmatprep.subr.mxu0 %v598
    %728 = vmatpush1.msra.mxu0 %v597
    %729 = vmatprep.subr.mxu0 %v600
    %730 = vmatpush1.msra.mxu0 %v599
    %731 = vmatprep.subr.mxu0 %v602
    %732 = vmatpush1.msra.mxu0 %v601
    %733 = vmatprep.subr.mxu0 %v604
    %734 = vmatpush1.msra.mxu0 %v603
    %735 = vmatprep.subr.mxu0 %v606
    %736 = vmatpush1.msra.mxu0 %v605
    %737 = vmatprep.subr.mxu0 %v608
    %738 = vmatpush1.msra.mxu0 %v607
    %739 = vmatprep.subr.mxu0 %v610
    %740 = vmatpush1.msra.mxu0 %v609
    %741 = vmatprep.subr.mxu0 %v612
    %742 = vmatpush1.msra.mxu0 %v611
    %743 = vmatprep.subr.mxu0 %v614
    %744 = vmatpush1.msra.mxu0 %v613
    %745 = vmatprep.subr.mxu0 %v616
    %746 = vmatpush1.msra.mxu0 %v615
    %747 = vmatprep.subr.mxu0 %v618
    %748 = vmatpush1.msra.mxu0 %v617
    %749 = vmatprep.subr.mxu0 %v620
    %750 = vmatpush1.msra.mxu0 %v619
    %751 = vmatprep.subr.mxu0 %v622
    %752 = vmatpush1.msra.mxu0 %v621
    %753 = vmatprep.subr.mxu0 %v624
    %754 = vmatpush1.msra.mxu0 %v623
    %755 = vmatprep.subr.mxu0 %v626
    %756 = vmatpush1.msra.mxu0 %v625
    %757 = vmatprep.subr.mxu0 %v628
    %758 = vmatpush1.msra.mxu0 %v627
    %759 = vmatprep.subr.mxu0 %v630
    %760 = vmatpush1.msra.mxu0 %v629
    %761 = vmatprep.mubr.f32.mxu0 %v556
    %762 = vmatmul.mubr.f32.gmra.mrb[0].mxu0 %v555
    %v763 = vpop.f32.mrb[0].mxu0
    %v764 = vadd.f32 %v696, %v763
    %v765 = vpop.f32.mrb[0].mxu0
    %v766 = vadd.f32 %v696, %v765
    %767 = vdwg.mxu0
    %768 = vmatprep.subr.mxu0 %v632
    %769 = vmatpush1.msra.mxu0 %v631
    %770 = vmatprep.subr.mxu0 %v634
    %771 = vmatpush1.msra.mxu0 %v633
    %772 = vmatprep.subr.mxu0 %v636
    %773 = vmatpush1.msra.mxu0 %v635
    %774 = vmatprep.subr.mxu0 %v638
    %775 = vmatpush1.msra.mxu0 %v637
    %776 = vmatprep.subr.mxu0 %v640
    %777 = vmatpush1.msra.mxu0 %v639
    %778 = vmatprep.subr.mxu0 %v642
    %779 = vmatpush1.msra.mxu0 %v641
    %780 = vmatprep.subr.mxu0 %v644
    %781 = vmatpush1.msra.mxu0 %v643
    %782 = vmatprep.subr.mxu0 %v646
    %783 = vmatpush1.msra.mxu0 %v645
    %784 = vmatprep.subr.mxu0 %v648
    %785 = vmatpush1.msra.mxu0 %v647
    %786 = vmatprep.subr.mxu0 %v650
    %787 = vmatpush1.msra.mxu0 %v649
    %788 = vmatprep.subr.mxu0 %v652
    %789 = vmatpush1.msra.mxu0 %v651
    %790 = vmatprep.subr.mxu0 %v654
    %791 = vmatpush1.msra.mxu0 %v653
    %792 = vmatprep.subr.mxu0 %v656
    %793 = vmatpush1.msra.mxu0 %v655
    %794 = vmatprep.subr.mxu0 %v658
    %795 = vmatpush1.msra.mxu0 %v657
    %796 = vmatprep.subr.mxu0 %v660
    %797 = vmatpush1.msra.mxu0 %v659
    %798 = vmatprep.subr.mxu0 %v662
    %799 = vmatpush1.msra.mxu0 %v661
    %800 = vmatprep.subr.mxu0 %v664
    %801 = vmatpush1.msra.mxu0 %v663
    %802 = vmatprep.subr.mxu0 %v666
    %803 = vmatpush1.msra.mxu0 %v665
    %804 = vmatprep.subr.mxu0 %v668
    %805 = vmatpush1.msra.mxu0 %v667
    %806 = vmatprep.subr.mxu0 %v670
    %807 = vmatpush1.msra.mxu0 %v669
    %808 = vmatprep.subr.mxu0 %v672
    %809 = vmatpush1.msra.mxu0 %v671
    %810 = vmatprep.subr.mxu0 %v674
    %811 = vmatpush1.msra.mxu0 %v673
    %812 = vmatprep.subr.mxu0 %v676
    %813 = vmatpush1.msra.mxu0 %v675
    %814 = vmatprep.subr.mxu0 %v678
    %815 = vmatpush1.msra.mxu0 %v677
    %816 = vmatprep.subr.mxu0 %v680
    %817 = vmatpush1.msra.mxu0 %v679
    %818 = vmatprep.subr.mxu0 %v682
    %819 = vmatpush1.msra.mxu0 %v681
    %820 = vmatprep.subr.mxu0 %v684
    %821 = vmatpush1.msra.mxu0 %v683
    %822 = vmatprep.subr.mxu0 %v686
    %823 = vmatpush1.msra.mxu0 %v685
    %824 = vmatprep.subr.mxu0 %v688
    %825 = vmatpush1.msra.mxu0 %v687
    %826 = vmatprep.subr.mxu0 %v690
    %827 = vmatpush1.msra.mxu0 %v689
    %828 = vmatprep.subr.mxu0 %v692
    %829 = vmatpush1.msra.mxu0 %v691
    %830 = vmatprep.subr.mxu0 %v694
    %831 = vmatpush1.msra.mxu0 %v693
    %832 = vmatprep.mubr.f32.mxu0 %v564
    %833 = vmatmul.mubr.f32.gmra.mrb[0].mxu0 %v563
    %v834 = vpop.f32.mrb[0].mxu0
    %v835 = vadd.f32 %v764, %v834
    %v836 = vpop.f32.mrb[0].mxu0
    %v837 = vadd.f32 %v766, %v836
    %838 = vdwg.mxu0
    %v839 = vld [vmem:[%s7] sm:$0xff]
    %v840 = vld [vmem:[%s7 + $0x8] sm:$0xff]
    %v841 = vld [vmem:[%s7 + $0x10] sm:$0xff]
    %v842 = vld [vmem:[%s7 + $0x18] sm:$0xff]
    %v843 = vld [vmem:[%s7 + $0x20] sm:$0xff]
    %v844 = vld [vmem:[%s7 + $0x28] sm:$0xff]
    %v845 = vld [vmem:[%s7 + $0x30] sm:$0xff]
    %v846 = vld [vmem:[%s7 + $0x38] sm:$0xff]
    %v847 = vld [vmem:[%s7 + $0x40] sm:$0xff]
    %v848 = vld [vmem:[%s7 + $0x48] sm:$0xff]
    %v849 = vld [vmem:[%s7 + $0x50] sm:$0xff]
    %v850 = vld [vmem:[%s7 + $0x58] sm:$0xff]
    %v851 = vld [vmem:[%s7 + $0x60] sm:$0xff]
    %v852 = vld [vmem:[%s7 + $0x68] sm:$0xff]
    %v853 = vld [vmem:[%s7 + $0x70] sm:$0xff]
    %v854 = vld [vmem:[%s7 + $0x78] sm:$0xff]
    %v855 = vsub.f32 0.0, %v835
    %v856 = vsub.f32 0.0, %v837
    %v857 = vmul.f32 %v855, 1.442695
    %v858 = vpow.pop %v857
    %v859 = vmul.f32 %v856, 1.442695
    %v860 = vpow.pop %v859
    %v861 = vadd.f32 %v858, 1.0
    %v862 = vadd.f32 %v860, 1.0
    %v863 = vrcp.pop %v861
    %v864 = vmul.f32 1.0, %v863
    %v865 = vrcp.pop %v862
    %v866 = vmul.f32 1.0, %v865
    %v869 = vcombine.low %v864, %v866
    %v871 = vunpack.c.l.s4 1966171168
    %v872 = vunpack.c.0.s8 %v871
    %v873 = vlaneseq
    %v874 = vshrl.u32 %v873, 7
    %v875 = vsub.s32 %v872, %v874
    %v876 = vrot.slane %v869, %v875
    %v877 = vcombine.high %v876, %v876
    %v879 = vunpack.c.l.s4 1966171168
    %v880 = vunpack.c.0.s8 %v879
    %v881 = vlaneseq
    %v882 = vshrl.u32 %v881, 7
    %v883 = vsub.s32 %v880, %v882
    %v884 = vrot.slane %v876, %v883
    %v886 = vunpack.c.l.s4 1966171168
    %v887 = vunpack.c.0.s8 %v886
    %v888 = vlaneseq
    %v889 = vshrl.u32 %v888, 7
    %v890 = vsub.s32 %v887, %v889
    %v891 = vrot.slane %v877, %v890
    %v892 = vlaneseq
    %v893 = vshrl.u32 %v892, 7
    %v894 = vsub.s32 0, %v893
    %v895 = vrot.slane %v884, %v894
    %v896 = vlaneseq
    %v897 = vshrl.u32 %v896, 7
    %v898 = vsub.s32 1, %v897
    %v899 = vrot.slane %v884, %v898
    %v900 = vlaneseq
    %v901 = vshrl.u32 %v900, 7
    %v902 = vsub.s32 0, %v901
    %v903 = vrot.slane %v891, %v902
    %v904 = vlaneseq
    %v905 = vshrl.u32 %v904, 7
    %v906 = vsub.s32 1, %v905
    %v907 = vrot.slane %v891, %v906
    %v912 = vmul.f32 %v839, %v895
    %v913 = vmul.f32 %v840, %v899
    %v914 = vmul.f32 %v841, %v895
    %v915 = vmul.f32 %v842, %v899
    %v916 = vmul.f32 %v843, %v895
    %v917 = vmul.f32 %v844, %v899
    %v918 = vmul.f32 %v845, %v895
    %v919 = vmul.f32 %v846, %v899
    %v920 = vmul.f32 %v847, %v903
    %v921 = vmul.f32 %v848, %v907
    %v922 = vmul.f32 %v849, %v903
    %v923 = vmul.f32 %v850, %v907
    %v924 = vmul.f32 %v851, %v903
    %v925 = vmul.f32 %v852, %v907
    %v926 = vmul.f32 %v853, %v903
    %v927 = vmul.f32 %v854, %v907
    %928 = vst [vmem:[%s7] sm:$0xff] %v912
    %929 = vst [vmem:[%s7 + $0x8] sm:$0xff] %v913
    %930 = vst [vmem:[%s7 + $0x10] sm:$0xff] %v914
    %931 = vst [vmem:[%s7 + $0x18] sm:$0xff] %v915
    %932 = vst [vmem:[%s7 + $0x20] sm:$0xff] %v916
    %933 = vst [vmem:[%s7 + $0x28] sm:$0xff] %v917
    %934 = vst [vmem:[%s7 + $0x30] sm:$0xff] %v918
    %935 = vst [vmem:[%s7 + $0x38] sm:$0xff] %v919
    %936 = vst [vmem:[%s7 + $0x40] sm:$0xff] %v920
    %937 = vst [vmem:[%s7 + $0x48] sm:$0xff] %v921
    %938 = vst [vmem:[%s7 + $0x50] sm:$0xff] %v922
    %939 = vst [vmem:[%s7 + $0x58] sm:$0xff] %v923
    %940 = vst [vmem:[%s7 + $0x60] sm:$0xff] %v924
    %941 = vst [vmem:[%s7 + $0x68] sm:$0xff] %v925
    %942 = vst [vmem:[%s7 + $0x70] sm:$0xff] %v926
    %943 = vst [vmem:[%s7 + $0x78] sm:$0xff] %v927
    // Predicated region
    $region34: #{cbam_forward.1} parent=1 // pred_check
      _
    $region35: #{cbam_forward.1} parent=1 // pred_check_branch
      %945 = sbr.rel (0) target = $region37
    $region36: #{cbam_forward.1} parent=1 // pred_region
      _
    $region37: #{cbam_forward.1} parent=1 // pred_fallthru
      _
    // Predicated region
    $region38: #{cbam_forward.1} parent=1 // pred_check
      _
    $region39: #{cbam_forward.1} parent=1 // pred_check_branch
      %947 = sbr.rel (0) target = $region41
    $region40: #{cbam_forward.1} parent=1 // pred_region
      _
    $region41: #{cbam_forward.1} parent=1 // pred_fallthru
      _
    %948 = vsyncpa [#allocation4], 1

</llo_original>
